<compile_context>
chip_gen: v6e
topology: v6e:2x2x1
jax: 0.10.0
libtpu: 0.0.40
codegen_flags: <defaults>
</compile_context>

<pallas_src>
import jax
import jax.numpy as jnp
from jax import lax
from jax.experimental import pallas as pl
from jax.experimental.pallas import tpu as pltpu


def _round_up(x, m):
    return ((x + m - 1) // m) * m


def _cdiv(a, b):
    return -(-a // b)


def kmeans_kernel(h_ref, f_ref, g_out_ref, ss_out_ref, g_acc, ss_acc):
    """Grid = (cores, steps). Axis 0 parallel (per-core), axis 1 serial reduce."""
    i = pl.program_id(1)

    @pl.when(i == 0)
    def _():
        g_acc[...] = jnp.zeros_like(g_acc)
        ss_acc[...] = jnp.zeros_like(ss_acc)

    h = h_ref[...]                                  # (TN, D), native dtype
    f = f_ref[...]                                  # (TN, K), native dtype

    # G += h^T @ f : contract the row/tile axis of both operands on the MXU,
    # f32 accumulation.  (If the lowered bundle ever shows a per-tile XLU
    # vxpose of the LHS, switching to pl.dot(h, f, trans_a=True) is the
    # drop-in alternative; same dimension numbers otherwise.)
    g_acc[...] += lax.dot_general(
        h, f, (((0,), (0,)), ((), ())), preferred_element_type=jnp.float32
    )                                               # (D, K)

    # trace(W^T W) = ||h||_F^2.  Pure VPU elementwise accumulate per step;
    # the cross-lane reduce happens exactly once in the epilogue.
    hf = h.astype(jnp.float32)
    ss_acc[...] += hf * hf                          # (TN, D)

    @pl.when(i == pl.num_programs(1) - 1)
    def _():
        g_out_ref[...] = g_acc[...]                               # (D, K)
        ss_out_ref[...] = jnp.sum(ss_acc[...], keepdims=True)     # (1, 1)


def kmeans_loss(h_real, F, *, block_rows=8192, force_pallas=False,
                small_bytes=1 << 20):
    """loss = trace(h h^T) - trace(F^T h h^T F), streamed over rows of h / F."""
    N, D = h_real.shape
    N2, K = F.shape
    assert N == N2, (N, N2)

    itemsize = jnp.dtype(h_real.dtype).itemsize

    # ---- tiny-problem short-circuit: kernel launch overhead > total compute.
    if not force_pallas and N * (D + K) * itemsize < small_bytes:
        hf = h_real.astype(jnp.float32)
        g = jnp.dot(h_real.T, F, preferred_element_type=jnp.float32)
        return jnp.sum(hf * hf) - jnp.sum(g * g)

    # ---- tile selection against a VMEM budget using LANE-PADDED widths.
    Dp = _round_up(D, 128)                    # h tile lane width in VMEM
    Kp = _round_up(K, 128)                    # F tile lane width in VMEM
    # per-row VMEM cost: double-buffered h + F input tiles, plus the f32
    # (tn, D) elementwise ss accumulator (also lane-padded).
    per_row = 2 * (Dp + Kp) * itemsize + Dp * 4
    budget = 24 << 20                         # safe on v5e/v6e/v7x scoped VMEM
    tn_cap = max(256, (budget // per_row) // 256 * 256)
    tn = min(block_rows, tn_cap, _round_up(N, 8))
    if tn >= 256:
        tn -= tn % 256                        # MXU / (8,128)-friendly
    else:
        tn = _round_up(tn, 8)

    n_blocks = _cdiv(N, tn)
    n_cores = 2 if n_blocks >= 2 else 1       # v7x: one row-range per TC;
    steps = _cdiv(n_blocks, n_cores)          # v5e/v6e: runs serially, same result
    n_pad = n_cores * steps * tn
    if n_pad != N:                            # zero rows contribute nothing
        h_real = jnp.pad(h_real, ((0, n_pad - N), (0, 0)))
        F = jnp.pad(F, ((0, n_pad - N), (0, 0)))

    grid = (n_cores, steps)

    # VMEM budget with padded sizes (inputs double-buffered by the pipeline).
    vmem_need = (2 * tn * (Dp + Kp) * itemsize          # input tiles (x2 buf)
                 + tn * Dp * 4                          # ss accumulator
                 + _round_up(D, 8) * Kp * 4             # G accumulator
                 + 2 * (_round_up(D, 8) * Kp + 8 * 128) * 4)  # tiny outputs
    vmem_limit = int(min(vmem_need + (4 << 20), 48 << 20))

    cost = pl.CostEstimate(
        flops=2 * N * D * K + 2 * N * D,
        transcendentals=0,
        bytes_accessed=N * (D + K) * itemsize + n_cores * (D * K + 1) * 4,
    )

    g_part, ss_part = pl.pallas_call(
        kmeans_kernel,
        out_shape=(
            jax.ShapeDtypeStruct((n_cores, D, K), jnp.float32),   # per-core G
            jax.ShapeDtypeStruct((n_cores, 1, 1), jnp.float32),   # per-core ss
        ),
        grid_spec=pltpu.PrefetchScalarGridSpec(
            num_scalar_prefetch=0,
            grid=grid,
            in_specs=[
                pl.BlockSpec((tn, D), lambda c, i: (c * steps + i, 0)),  # h
                pl.BlockSpec((tn, K), lambda c, i: (c * steps + i, 0)),  # F
            ],
            out_specs=[
                pl.BlockSpec((None, D, K), lambda c, i: (c, 0, 0)),
                pl.BlockSpec((None, 1, 1), lambda c, i: (c, 0, 0)),
            ],
            scratch_shapes=[
                pltpu.VMEM((D, K), jnp.float32),      # G accumulator
                pltpu.VMEM((tn, D), jnp.float32),     # sum(h*h) partials
            ],
        ),
        compiler_params=pltpu.CompilerParams(
            dimension_semantics=("parallel", "arbitrary"),
            vmem_limit_bytes=vmem_limit,
        ),
        cost_estimate=cost,
    )(h_real, F)

    g_total = jnp.sum(g_part, axis=0)                 # (D, K) — combine cores
    return jnp.sum(ss_part) - jnp.sum(g_total * g_total)

    # TODO(synk): optionally cast h/F to bfloat16 before the call (accumulation
    # is already f32) to halve HBM traffic when the training loop tolerates it.


def kmeans_loss_ref(h_real, F):
    wtw = h_real @ h_real.T
    ftwtwf = F.T @ wtw @ F
    return jnp.trace(wtw) - jnp.trace(ftwtwf)


if __name__ == "__main__":
    # Small shapes consistent with the module:
    #   batch_size = 2, timeseries = 8  -> N = 16 rows
    #   hidden feature dim D = 32, n_clusters K = 4
    batch_size, timeseries, hidden, n_clusters = 2, 8, 32, 4
    N = batch_size * timeseries

    key = jax.random.PRNGKey(0)
    k_h, k_f = jax.random.split(key)

    h_real = jax.random.normal(k_h, (N, hidden), dtype=jnp.float32)

    # Deterministic orthogonal init for F (N, K), mirroring nn.init.orthogonal_.
    F_raw = jax.random.normal(k_f, (N, n_clusters), dtype=jnp.float32)
    F, _ = jnp.linalg.qr(F_raw)                       # (N, K) column-orthonormal

    # Force the Pallas path with 2 row tiles so the streamed accumulation and
    # per-core partial outputs are exercised at small shape.
    loss = kmeans_loss(h_real, F, block_rows=8, force_pallas=True)
    jax.block_until_ready(loss)
    loss_ref = kmeans_loss_ref(h_real, F)
    assert jnp.allclose(loss, loss_ref, rtol=1e-4, atol=1e-3), (loss, loss_ref)

    # Medium shape: exercises large tiles, the 2-way core split and zero-row
    # padding (5000 rows -> 2 cores x 2 steps x 2048-row tiles).
    N2 = 5000
    k_h2, k_f2 = jax.random.split(jax.random.PRNGKey(1))
    h2 = jax.random.normal(k_h2, (N2, hidden), dtype=jnp.float32)
    F2_raw = jax.random.normal(k_f2, (N2, n_clusters), dtype=jnp.float32)
    F2, _ = jnp.linalg.qr(F2_raw)
    loss2 = kmeans_loss(h2, F2, block_rows=2048, force_pallas=True)
    jax.block_until_ready(loss2)
    g2 = h2.T @ F2
    loss2_ref = jnp.sum(h2 * h2) - jnp.sum(g2 * g2)
    rel = jnp.abs(loss2 - loss2_ref) / jnp.maximum(jnp.abs(loss2_ref), 1.0)
    assert rel < 1e-2, (loss2, loss2_ref, rel)

    print("KERNEL_OK")
</pallas_src>

<mosaic_0001>
module attributes {stable_mosaic.version = 11 : i64} {
  func.func @kmeans_kernel(%arg0: i32, %arg1: i32, %arg2: memref<8x32xf32, #tpu.memory_space<vmem>>, %arg3: memref<8x4xf32, #tpu.memory_space<vmem>>, %arg4: memref<1x32x4xf32, #tpu.memory_space<vmem>>, %arg5: memref<1x1x1xf32, #tpu.memory_space<vmem>>, %arg6: memref<32x4xf32, #tpu.memory_space<vmem>>, %arg7: memref<8x32xf32, #tpu.memory_space<vmem>>) attributes {dimension_semantics = [#tpu.dimension_semantics<parallel>, #tpu.dimension_semantics<arbitrary>], iteration_bounds = array<i64: 2, 1>, scalar_prefetch = 0 : i64, scratch_operands = 2 : i64, tpu.core_type = #tpu.core_type<tc>, window_params = [{transform_indices = @transform_0, window_bounds = array<i64: 8, 32>}, {transform_indices = @transform_1, window_bounds = array<i64: 8, 4>}, {transform_indices = @transform_2, window_bounds = array<i64: 1, 32, 4>}, {transform_indices = @transform_3, window_bounds = array<i64: 1, 1, 1>}]} {
    %c0_i32 = arith.constant 0 : i32
    %0 = arith.cmpi eq, %arg1, %c0_i32 : i32
    %1 = arith.extui %0 : i1 to i32
    %c0_i32_0 = arith.constant 0 : i32
    %2 = arith.cmpi ne, %1, %c0_i32_0 : i32
    scf.if %2 {
      %cst_14 = arith.constant 0.000000e+00 : f32
      %16 = vector.broadcast %cst_14 : f32 to vector<32x4xf32>
      %c0_15 = arith.constant 0 : index
      %c0_16 = arith.constant 0 : index
      %17 = vector.load %arg6[%c0_15, %c0_16] : memref<32x4xf32, #tpu.memory_space<vmem>>, vector<32x4xf32>
      tpu.vector_store %arg6[%c0_15, %c0_16], %16 {strides = array<i32>} : memref<32x4xf32, #tpu.memory_space<vmem>>, vector<32x4xf32>,
      %cst_17 = arith.constant 0.000000e+00 : f32
      %18 = vector.broadcast %cst_17 : f32 to vector<8x32xf32>
      %c0_18 = arith.constant 0 : index
      %c0_19 = arith.constant 0 : index
      %19 = vector.load %arg7[%c0_18, %c0_19] : memref<8x32xf32, #tpu.memory_space<vmem>>, vector<8x32xf32>
      tpu.vector_store %arg7[%c0_18, %c0_19], %18 {strides = array<i32>} : memref<8x32xf32, #tpu.memory_space<vmem>>, vector<8x32xf32>,
    } else {
    }
    %c0 = arith.constant 0 : index
    %c0_1 = arith.constant 0 : index
    %3 = vector.load %arg2[%c0, %c0_1] : memref<8x32xf32, #tpu.memory_space<vmem>>, vector<8x32xf32>
    %c0_2 = arith.constant 0 : index
    %c0_3 = arith.constant 0 : index
    %4 = vector.load %arg3[%c0_2, %c0_3] : memref<8x4xf32, #tpu.memory_space<vmem>>, vector<8x4xf32>
    %c0_4 = arith.constant 0 : index
    %c0_5 = arith.constant 0 : index
    %5 = vector.load %arg6[%c0_4, %c0_5] : memref<32x4xf32, #tpu.memory_space<vmem>>, vector<32x4xf32>
    %cst = arith.constant dense<0.000000e+00> : vector<32x4xf32>
    %6 = tpu.matmul %3, %4, %cst {dimension_numbers = #tpu.dot_dimension_numbers<[0], [0], [1], [1], [0, 1, 1, 1], [], []>} : vector<8x32xf32>, vector<8x4xf32>, vector<32x4xf32> -> vector<32x4xf32>
    %7 = arith.addf %5, %6 : vector<32x4xf32>
    %c0_6 = arith.constant 0 : index
    %c0_7 = arith.constant 0 : index
    %8 = vector.load %arg6[%c0_6, %c0_7] : memref<32x4xf32, #tpu.memory_space<vmem>>, vector<32x4xf32>
    tpu.vector_store %arg6[%c0_6, %c0_7], %7 {strides = array<i32>} : memref<32x4xf32, #tpu.memory_space<vmem>>, vector<32x4xf32>,
    %c0_8 = arith.constant 0 : index
    %c0_9 = arith.constant 0 : index
    %9 = vector.load %arg7[%c0_8, %c0_9] : memref<8x32xf32, #tpu.memory_space<vmem>>, vector<8x32xf32>
    %10 = arith.mulf %3, %3 : vector<8x32xf32>
    %11 = arith.addf %9, %10 : vector<8x32xf32>
    %c0_10 = arith.constant 0 : index
    %c0_11 = arith.constant 0 : index
    %12 = vector.load %arg7[%c0_10, %c0_11] : memref<8x32xf32, #tpu.memory_space<vmem>>, vector<8x32xf32>
    tpu.vector_store %arg7[%c0_10, %c0_11], %11 {strides = array<i32>} : memref<8x32xf32, #tpu.memory_space<vmem>>, vector<8x32xf32>,
    %c0_i32_12 = arith.constant 0 : i32
    %13 = arith.cmpi eq, %arg1, %c0_i32_12 : i32
    %14 = arith.extui %13 : i1 to i32
    %c0_i32_13 = arith.constant 0 : i32
    %15 = arith.cmpi ne, %14, %c0_i32_13 : i32
    scf.if %15 {
      %c0_14 = arith.constant 0 : index
      %c0_15 = arith.constant 0 : index
      %16 = vector.load %arg6[%c0_14, %c0_15] : memref<32x4xf32, #tpu.memory_space<vmem>>, vector<32x4xf32>
      %c0_16 = arith.constant 0 : index
      %c0_17 = arith.constant 0 : index
      %c0_18 = arith.constant 0 : index
      %17 = vector.load %arg4[%c0_16, %c0_17, %c0_18] : memref<1x32x4xf32, #tpu.memory_space<vmem>>, vector<1x32x4xf32>
      %18 = vector.shape_cast %17 : vector<1x32x4xf32> to vector<32x4xf32>
      %19 = vector.shape_cast %16 : vector<32x4xf32> to vector<1x32x4xf32>
      tpu.vector_store %arg4[%c0_16, %c0_17, %c0_18], %19 {strides = array<i32>} : memref<1x32x4xf32, #tpu.memory_space<vmem>>, vector<1x32x4xf32>,
      %c0_19 = arith.constant 0 : index
      %c0_20 = arith.constant 0 : index
      %20 = vector.load %arg7[%c0_19, %c0_20] : memref<8x32xf32, #tpu.memory_space<vmem>>, vector<8x32xf32>
      %21 = vector.shape_cast %20 : vector<8x32xf32> to vector<1x8x32xf32>
      %cst_21 = arith.constant dense<0.000000e+00> : vector<1xf32>
      %22 = vector.multi_reduction <add>, %21, %cst_21 [1, 2] : vector<1x8x32xf32> to vector<1xf32>
      %23 = vector.shape_cast %22 : vector<1xf32> to vector<1x1x1xf32>
      %24 = vector.extract %23[0, 0, 0] : f32 from vector<1x1x1xf32>
      %25 = vector.broadcast %24 : f32 to vector<1x1xf32>
      %c0_22 = arith.constant 0 : index
      %c0_23 = arith.constant 0 : index
      %c0_24 = arith.constant 0 : index
      %26 = vector.load %arg5[%c0_22, %c0_23, %c0_24] : memref<1x1x1xf32, #tpu.memory_space<vmem>>, vector<1x1x1xf32>
      %27 = vector.shape_cast %26 : vector<1x1x1xf32> to vector<1x1xf32>
      %28 = vector.shape_cast %25 : vector<1x1xf32> to vector<1x1x1xf32>
      tpu.vector_store %arg5[%c0_22, %c0_23, %c0_24], %28 {strides = array<i32>} : memref<1x1x1xf32, #tpu.memory_space<vmem>>, vector<1x1x1xf32>,
    } else {
    }
    return
  }
  func.func @transform_0(%arg0: i32, %arg1: i32) -> (i32, i32) {
    %c1_i32 = arith.constant 1 : i32
    %0 = arith.muli %arg0, %c1_i32 : i32
    %1 = arith.addi %0, %arg1 : i32
    %c0_i32 = arith.constant 0 : i32
    %c0_i32_0 = arith.constant 0 : i32
    return %1, %c0_i32 : i32, i32
  }
  func.func @transform_1(%arg0: i32, %arg1: i32) -> (i32, i32) {
    %c1_i32 = arith.constant 1 : i32
    %0 = arith.muli %arg0, %c1_i32 : i32
    %1 = arith.addi %0, %arg1 : i32
    %c0_i32 = arith.constant 0 : i32
    %c0_i32_0 = arith.constant 0 : i32
    return %1, %c0_i32 : i32, i32
  }
  func.func @transform_2(%arg0: i32, %arg1: i32) -> (i32, i32, i32) {
    %c0_i32 = arith.constant 0 : i32
    %c0_i32_0 = arith.constant 0 : i32
    %c0_i32_1 = arith.constant 0 : i32
    return %arg0, %c0_i32, %c0_i32_0 : i32, i32, i32
  }
  func.func @transform_3(%arg0: i32, %arg1: i32) -> (i32, i32, i32) {
    %c0_i32 = arith.constant 0 : i32
    %c0_i32_0 = arith.constant 0 : i32
    %c0_i32_1 = arith.constant 0 : i32
    return %arg0, %c0_i32, %c0_i32_0 : i32, i32, i32
  }
}

</mosaic_0001>

<llo_original>
// kernel: tpu_custom_call.1
$region0: #{tpu_custom_call.1}
  #allocation0 [shape = 'u32[]', space=smem, size = 0x4, offset = 0x4, fixed_abs, tag = 'smem constant byte address 0x4 - core index']
  #allocation1 [shape = 'u32[144,128]{1,0:T(1,128)}', space=vmem, size = 0x12000, scoped, tag = 'internal scratch']
  #allocation2 [shape = 'f32[32,4]{1,0:T(8,128)}', space=vmem, size = 0x4000, scoped, tag = 'scratch operand']
  #allocation3 [shape = 'f32[8,32]{1,0:T(8,128)}', space=vmem, size = 0x1000, scoped, tag = 'scratch operand']
  %s0 = inlined_call_operand.vmem [shape: f32[16,32], index: 0, kind: input, shape index: {}]
  %s1 = inlined_call_operand.vmem [shape: f32[16,4], index: 1, kind: input, shape index: {}]
  %s2 = inlined_call_operand.vmem [shape: f32[2,32,4], index: 2, kind: output, shape index: {0}]
  %s3 = inlined_call_operand.vmem [shape: f32[2,1,1], index: 3, kind: output, shape index: {1}]
  %4 = xla_tuple %s2, %s3
  %s5 = sld [smem:[#allocation0]]
  $region57: #{tpu_custom_call.1} parent=0
    _
  %s7 = ssub.s32 1, %s5
  %s8 = scalar_select 0, %s7, %s5
  loop: start=0, step=1, limit=4
  $region2: #{tpu_custom_call.1} parent=0 // loop_pre_header
    _
  $region3: #{tpu_custom_call.1} parent=0 // loop_header
    %s10 = sphi 0, %s14
    %p11 = scmp.ge.s32.totalorder %s10, 4
    %s17 = sphi 0, %s29
    %s18 = sphi 0, %s25
    %s19 = sphi 0, %s17
    %s20 = sphi 0, %s18
    %s21 = sphi 0, %s19
    %s22 = sphi 0, %s20
    %s34 = sphi 0, %s36
    %s37 = sphi 0, %s34
    %s38 = sphi 0, %s37
    %s54 = sphi 0, %s38
    %s62 = sphi 0, %s64
    %s65 = sphi 0, %s62
    %s66 = sphi 0, %s65
    %s82 = sphi 0, %s66
    %s88 = sphi 0, %s90
    %s91 = sphi 0, %s88
    %s92 = sphi 0, %s91
    %s108 = sphi 0, %s92
    %s114 = sphi 0, %s116
    %s117 = sphi 0, %s114
    %s118 = sphi 0, %s117
    %s134 = sphi 0, %s118
  $region4: #{tpu_custom_call.1} parent=0 // loop_header_branch
    %13 = sbr.rel (%p11) target = $region8
  $region5: #{tpu_custom_call.1} parent=0 // loop_body
    %s15 = ssub.s32 %s10, 1
    %s16 = ssub.s32 %s10, 2
    %s23 = sadd.s32 1, %s18
    %p24 = scmp.ge.s32.totalorder %s23, 1
    %s25 = scalar_select %p24, 0, %s23
    %s26 = sadd.s32 1, %s17
    %s27 = scalar_select %p24, %s26, %s17
    %p28 = scmp.ge.s32.totalorder %s27, 2
    %s29 = scalar_select %p28, 0, %s27
    %s30 = sadd.s32 %s17, %s18
    %s31 = sadd.s32 %s29, %s25
    %s32 = ssub.s32 %s30, %s31
    %p33 = scmp.eq.s32.totalorder %s32, 0
    %s35 = sadd.s32 %s34, 1
    %s36 = scalar_select %p33, %s34, %s35
    %p39 = pneg %p33
    %p40 = scmp.eq.s32.totalorder %s10, 1
    %p41 = por %p39, %p40
    %p42 = scmp.ne.s32.totalorder %s34, %s37
    %p43 = scmp.eq.s32.totalorder %s10, 0
    %p44 = por %p42, %p43
    %p45 = scmp.ne.s32.totalorder %s34, %s37
    %p46 = scmp.eq.s32.totalorder %s15, 1
    %p47 = por %p45, %p46
    %p48 = scmp.ne.s32.totalorder %s37, %s38
    %p49 = scmp.eq.s32.totalorder %s15, 0
    %p50 = por %p48, %p49
    %p51 = scmp.ne.s32.totalorder %s37, %s38
    %p52 = scmp.eq.s32.totalorder %s16, 1
    %p53 = por %p51, %p52
    %p55 = scmp.ne.s32.totalorder %s38, %s54
    %p56 = scmp.eq.s32.totalorder %s16, 0
    %p57 = por %p55, %p56
    %s58 = sadd.s32 %s17, %s18
    %s59 = sadd.s32 %s29, %s25
    %s60 = ssub.s32 %s58, %s59
    %p61 = scmp.eq.s32.totalorder %s60, 0
    %s63 = sadd.s32 %s62, 1
    %s64 = scalar_select %p61, %s62, %s63
    %p67 = pneg %p61
    %p68 = scmp.eq.s32.totalorder %s10, 1
    %p69 = por %p67, %p68
    %p70 = scmp.ne.s32.totalorder %s62, %s65
    %p71 = scmp.eq.s32.totalorder %s10, 0
    %p72 = por %p70, %p71
    %p73 = scmp.ne.s32.totalorder %s62, %s65
    %p74 = scmp.eq.s32.totalorder %s15, 1
    %p75 = por %p73, %p74
    %p76 = scmp.ne.s32.totalorder %s65, %s66
    %p77 = scmp.eq.s32.totalorder %s15, 0
    %p78 = por %p76, %p77
    %p79 = scmp.ne.s32.totalorder %s65, %s66
    %p80 = scmp.eq.s32.totalorder %s16, 1
    %p81 = por %p79, %p80
    %p83 = scmp.ne.s32.totalorder %s66, %s82
    %p84 = scmp.eq.s32.totalorder %s16, 0
    %p85 = por %p83, %p84
    %s86 = ssub.s32 %s17, %s29
    %p87 = scmp.eq.s32.totalorder %s86, 0
    %s89 = sadd.s32 %s88, 1
    %s90 = scalar_select %p87, %s88, %s89
    %p93 = pneg %p87
    %p94 = scmp.eq.s32.totalorder %s10, 1
    %p95 = por %p93, %p94
    %p96 = scmp.ne.s32.totalorder %s88, %s91
    %p97 = scmp.eq.s32.totalorder %s10, 0
    %p98 = por %p96, %p97
    %p99 = scmp.ne.s32.totalorder %s88, %s91
    %p100 = scmp.eq.s32.totalorder %s15, 1
    %p101 = por %p99, %p100
    %p102 = scmp.ne.s32.totalorder %s91, %s92
    %p103 = scmp.eq.s32.totalorder %s15, 0
    %p104 = por %p102, %p103
    %p105 = scmp.ne.s32.totalorder %s91, %s92
    %p106 = scmp.eq.s32.totalorder %s16, 1
    %p107 = por %p105, %p106
    %p109 = scmp.ne.s32.totalorder %s92, %s108
    %p110 = scmp.eq.s32.totalorder %s16, 0
    %p111 = por %p109, %p110
    %s112 = ssub.s32 %s17, %s29
    %p113 = scmp.eq.s32.totalorder %s112, 0
    %s115 = sadd.s32 %s114, 1
    %s116 = scalar_select %p113, %s114, %s115
    %p119 = pneg %p113
    %p120 = scmp.eq.s32.totalorder %s10, 1
    %p121 = por %p119, %p120
    %p122 = scmp.ne.s32.totalorder %s114, %s117
    %p123 = scmp.eq.s32.totalorder %s10, 0
    %p124 = por %p122, %p123
    %p125 = scmp.ne.s32.totalorder %s114, %s117
    %p126 = scmp.eq.s32.totalorder %s15, 1
    %p127 = por %p125, %p126
    %p128 = scmp.ne.s32.totalorder %s117, %s118
    %p129 = scmp.eq.s32.totalorder %s15, 0
    %p130 = por %p128, %p129
    %p131 = scmp.ne.s32.totalorder %s117, %s118
    %p132 = scmp.eq.s32.totalorder %s16, 1
    %p133 = por %p131, %p132
    %p135 = scmp.ne.s32.totalorder %s118, %s134
    %p136 = scmp.eq.s32.totalorder %s16, 0
    %p137 = por %p135, %p136
    %p138 = scmp.le.s32.totalorder 1, %s10
    %p139 = scmp.lt.s32.totalorder %s10, 3
    %p140 = pnand %p138, %p139
    %p141 = pneg %p140
    // Predicated region
    $region9: #{tpu_custom_call.1} parent=5 // pred_check
      _
    $region10: #{tpu_custom_call.1} parent=5 // pred_check_branch
      %143 = sbr.rel (%p140) target = $region12
    $region11: #{tpu_custom_call.1} parent=5 // pred_region
      %s144 = ssub.s32 %s10, 1
    $region12: #{tpu_custom_call.1} parent=5 // pred_fallthru
      _
    %p145 = scmp.lt.s32.totalorder %s10, 2
    // Predicated region
    $region13: #{tpu_custom_call.1} parent=5 // pred_check
      %p146 = pneg %p145
    $region14: #{tpu_custom_call.1} parent=5 // pred_check_branch
      %148 = sbr.rel (%p146) target = $region16
    $region15: #{tpu_custom_call.1} parent=5 // pred_region
      // Predicated region
      $region17: #{tpu_custom_call.1} parent=15 // pred_check
        %p149 = pneg %p44
      $region18: #{tpu_custom_call.1} parent=15 // pred_check_branch
        %151 = sbr.rel (%p149) target = $region20
      $region19: #{tpu_custom_call.1} parent=15 // pred_region
        %s152 = sadd.s32 %s17, %s18
        %p153 = scmp.lt.s32.totalorder %s152, 1
        %s154 = scalar_select %p153, %s152, 1
        %s155 = smul.addr %s154, 8
        %s156 = scalar_lea.vmem %s0, %s155
        %s157 = sadd.s32 %s17, %s18
      $region20: #{tpu_custom_call.1} parent=15 // pred_fallthru
        _
      // Predicated region
      $region21: #{tpu_custom_call.1} parent=15 // pred_check
        %p158 = pneg %p72
      $region22: #{tpu_custom_call.1} parent=15 // pred_check_branch
        %160 = sbr.rel (%p158) target = $region24
      $region23: #{tpu_custom_call.1} parent=15 // pred_region
        %s161 = sadd.s32 %s17, %s18
        %p162 = scmp.lt.s32.totalorder %s161, 1
        %s163 = scalar_select %p162, %s161, 1
        %s164 = smul.addr %s163, 8
        %s165 = scalar_lea.vmem %s1, %s164
        %s166 = sadd.s32 %s17, %s18
      $region24: #{tpu_custom_call.1} parent=15 // pred_fallthru
        _
    $region16: #{tpu_custom_call.1} parent=5 // pred_fallthru
      _
    %p167 = scmp.le.s32.totalorder 1, %s10
    %p168 = scmp.lt.s32.totalorder %s10, 3
    %p169 = pnand %p167, %p168
    %p170 = pneg %p169
    // Predicated region
    $region25: #{tpu_custom_call.1} parent=5 // pred_check
      _
    $region26: #{tpu_custom_call.1} parent=5 // pred_check_branch
      %172 = sbr.rel (%p169) target = $region28
    $region27: #{tpu_custom_call.1} parent=5 // pred_region
      %s173 = ssub.s32 %s10, 1
      %s174 = sadd.s32 %s19, %s20
      %p175 = scmp.lt.s32.totalorder %s174, 1
      %s176 = scalar_select %p175, %s174, 1
      %s177 = smul.addr %s176, 8
      %s178 = scalar_lea.vmem %s0, %s177
      %p179 = pneg %p50
      %p180 = pneg %p47
      %s181 = sadd.s32 %s19, %s20
      %p182 = scmp.lt.s32.totalorder %s181, 1
      %s183 = scalar_select %p182, %s181, 1
      %s184 = smul.addr %s183, 8
      %s185 = scalar_lea.vmem %s1, %s184
      %p186 = pneg %p78
      %p187 = pneg %p75
      %p188 = pneg %p104
      %p189 = pneg %p101
      %p190 = scmp.lt.s32.totalorder %s19, 1
      %s191 = scalar_select %p190, %s19, 1
      %s192 = smul.addr %s191, 4
      %s193 = smul.addr %s192, 8
      %s194 = scalar_lea.vmem %s2, %s193
      %p195 = pneg %p130
      %p196 = pneg %p127
      %p197 = scmp.lt.s32.totalorder %s19, 1
      %s198 = scalar_select %p197, %s19, 1
      %s199 = scalar_lea.vmem %s3, %s198
      %s200 = sadd.s32 %s19, %s20
      %p201 = scmp.lt.s32.totalorder %s200, 1
      %s202 = scalar_select %p201, %s200, 1
      %s203 = smul.addr %s202, 8
      %s204 = scalar_lea.vmem %s0, %s203
      %s205 = sadd.s32 %s19, %s20
      %s206 = sadd.s32 %s19, %s20
      %p207 = scmp.lt.s32.totalorder %s206, 1
      %s208 = scalar_select %p207, %s206, 1
      %s209 = smul.addr %s208, 8
      %s210 = scalar_lea.vmem %s1, %s209
      %s211 = sadd.s32 %s19, %s20
      %p212 = scmp.lt.s32.totalorder %s19, 1
      %s213 = scalar_select %p212, %s19, 1
      %s214 = smul.addr %s213, 4
      %s215 = smul.addr %s214, 8
      %s216 = scalar_lea.vmem %s2, %s215
      %p217 = scmp.lt.s32.totalorder %s19, 1
      %s218 = scalar_select %p217, %s19, 1
      %s219 = scalar_lea.vmem %s3, %s218
      %p220 = scmp.eq.s32.totalorder %s20, 0
      // Predicated region
      $region29: #{tpu_custom_call.1} parent=27 // pred_check
        %p221 = pneg %p220
      $region30: #{tpu_custom_call.1} parent=27 // pred_check_branch
        %223 = sbr.rel (%p221) target = $region32
      $region31: #{tpu_custom_call.1} parent=27 // pred_region
        %vm224 = vcmask 31744
        %225 = vst.msk [vmem:[#allocation2] sm:$0xff] %vm224, 0.0
        %226 = vst.msk [vmem:[#allocation2 + $0x8] sm:$0xff] %vm224, 0.0
        %227 = vst.msk [vmem:[#allocation2 + $0x10] sm:$0xff] %vm224, 0.0
        %228 = vst.msk [vmem:[#allocation2 + $0x18] sm:$0xff] %vm224, 0.0
        %vm229 = vcmask 261120
        %230 = vst.msk [vmem:[#allocation3] sm:$0xff] %vm229, 0.0
      $region32: #{tpu_custom_call.1} parent=27 // pred_fallthru
        _
      %v231 = vld [vmem:[%s204] sm:$0xff]
      %v232 = vld [vmem:[%s210] sm:$0xff]
      %v233 = vld [vmem:[#allocation2] sm:$0xff]
      %v234 = vld [vmem:[#allocation2 + $0x8] sm:$0xff]
      %v235 = vld [vmem:[#allocation2 + $0x10] sm:$0xff]
      %v236 = vld [vmem:[#allocation2 + $0x18] sm:$0xff]
      %237 = vxpose.xlu0.b32.start [1/16] %v231, 128
      %238 = vxpose.xlu0.b32.cont [2/16] 0.0, 128
      %239 = vxpose.xlu0.b32.cont [3/16] 0.0, 128
      %240 = vxpose.xlu0.b32.cont [4/16] 0.0, 128
      %241 = vxpose.xlu0.b32.cont [5/16] 0.0, 128
      %242 = vxpose.xlu0.b32.cont [6/16] 0.0, 128
      %243 = vxpose.xlu0.b32.cont [7/16] 0.0, 128
      %244 = vxpose.xlu0.b32.cont [8/16] 0.0, 128
      %245 = vxpose.xlu0.b32.cont [9/16] 0.0, 128
      %246 = vxpose.xlu0.b32.cont [10/16] 0.0, 128
      %247 = vxpose.xlu0.b32.cont [11/16] 0.0, 128
      %248 = vxpose.xlu0.b32.cont [12/16] 0.0, 128
      %249 = vxpose.xlu0.b32.cont [13/16] 0.0, 128
      %250 = vxpose.xlu0.b32.cont [14/16] 0.0, 128
      %251 = vxpose.xlu0.b32.cont [15/16] 0.0, 128
      %252 = vxpose.xlu0.b32.end [16/16] 0.0, 128
      %v253 = vpop.trf.xlu0
      %v254 = vpop.trf.xlu0
      %v255 = vpop.trf.xlu0
      %v256 = vpop.trf.xlu0
      %v257 = vpop.trf.xlu0
      %v258 = vpop.trf.xlu0
      %v259 = vpop.trf.xlu0
      %v260 = vpop.trf.xlu0
      %v261 = vpop.trf.xlu0
      %v262 = vpop.trf.xlu0
      %v263 = vpop.trf.xlu0
      %v264 = vpop.trf.xlu0
      %v265 = vpop.trf.xlu0
      %v266 = vpop.trf.xlu0
      %v267 = vpop.trf.xlu0
      %v268 = vpop.trf.xlu0
      %vm269 = vcmask 64512
      %v271 = vsel %vm269, %v253, 0
      %v274 = vsel %vm269, %v254, 0
      %v277 = vsel %vm269, %v255, 0
      %v280 = vsel %vm269, %v256, 0
      %282 = vmatprep.subr.mxu0 0.0
      %283 = vmatpush1.msra.mxu0 0.0
      %284 = vmatprep.subr.mxu0 0.0
      %285 = vmatpush1.msra.mxu0 0.0
      %286 = vmatprep.subr.mxu0 0.0
      %287 = vmatpush1.msra.mxu0 0.0
      %288 = vmatprep.subr.mxu0 0.0
      %289 = vmatpush1.msra.mxu0 0.0
      %290 = vmatprep.subr.mxu0 0.0
      %291 = vmatpush1.msra.mxu0 0.0
      %292 = vmatprep.subr.mxu0 0.0
      %293 = vmatpush1.msra.mxu0 0.0
      %294 = vmatprep.subr.mxu0 0.0
      %295 = vmatpush1.msra.mxu0 0.0
      %296 = vmatprep.subr.mxu0 0.0
      %297 = vmatpush1.msra.mxu0 0.0
      %298 = vmatprep.subr.mxu0 0.0
      %299 = vmatpush1.msra.mxu0 0.0
      %300 = vmatprep.subr.mxu0 0.0
      %301 = vmatpush1.msra.mxu0 0.0
      %302 = vmatprep.subr.mxu0 0.0
      %303 = vmatpush1.msra.mxu0 0.0
      %304 = vmatprep.subr.mxu0 0.0
      %305 = vmatpush1.msra.mxu0 0.0
      %306 = vmatprep.subr.mxu0 0.0
      %307 = vmatpush1.msra.mxu0 0.0
      %308 = vmatprep.subr.mxu0 0.0
      %309 = vmatpush1.msra.mxu0 0.0
      %310 = vmatprep.subr.mxu0 0.0
      %311 = vmatpush1.msra.mxu0 0.0
      %312 = vmatprep.subr.mxu0 0.0
      %313 = vmatpush1.msra.mxu0 %v232
      %314 = vmatprep.subr.mxu0 0.0
      %315 = vmatpush2.msra.mxu0 0.0
      %316 = vmatprep.subr.mxu0 0.0
      %317 = vmatpush2.msra.mxu0 0.0
      %318 = vmatprep.subr.mxu0 0.0
      %319 = vmatpush2.msra.mxu0 0.0
      %320 = vmatprep.subr.mxu0 0.0
      %321 = vmatpush2.msra.mxu0 0.0
      %322 = vmatprep.subr.mxu0 0.0
      %323 = vmatpush2.msra.mxu0 0.0
      %324 = vmatprep.subr.mxu0 0.0
      %325 = vmatpush2.msra.mxu0 0.0
      %326 = vmatprep.subr.mxu0 0.0
      %327 = vmatpush2.msra.mxu0 0.0
      %328 = vmatprep.subr.mxu0 0.0
      %329 = vmatpush2.msra.mxu0 0.0
      %330 = vmatprep.subr.mxu0 0.0
      %331 = vmatpush2.msra.mxu0 0.0
      %332 = vmatprep.subr.mxu0 0.0
      %333 = vmatpush2.msra.mxu0 0.0
      %334 = vmatprep.subr.mxu0 0.0
      %335 = vmatpush2.msra.mxu0 0.0
      %336 = vmatprep.subr.mxu0 0.0
      %337 = vmatpush2.msra.mxu0 0.0
      %338 = vmatprep.subr.mxu0 0.0
      %339 = vmatpush2.msra.mxu0 0.0
      %340 = vmatprep.subr.mxu0 0.0
      %341 = vmatpush2.msra.mxu0 0.0
      %342 = vmatprep.subr.mxu0 0.0
      %343 = vmatpush2.msra.mxu0 0.0
      %344 = vmatprep.subr.mxu0 0.0
      %345 = vmatpush2.msra.mxu0 0.0
      %346 = vmatprep.mubr.f32.mxu0 0.0
      %347 = vmatmul.mubr.f32.gmra.mxu0 %v271
      %v348 = vpop.f32.mrf.mxu0
      %v349 = vadd.f32 0.0, %v348
      %v350 = vpop.f32.mrf.mxu0
      %351 = vmatprep.mubr.f32.mxu0 0.0
      %352 = vmatmul.mubr.f32.gmra.mxu0 %v274
      %v353 = vpop.f32.mrf.mxu0
      %v354 = vadd.f32 0.0, %v353
      %v355 = vpop.f32.mrf.mxu0
      %356 = vmatprep.mubr.f32.mxu0 0.0
      %357 = vmatmul.mubr.f32.gmra.mxu0 %v277
      %v358 = vpop.f32.mrf.mxu0
      %v359 = vadd.f32 0.0, %v358
      %v360 = vpop.f32.mrf.mxu0
      %361 = vmatprep.mubr.f32.mxu0 0.0
      %362 = vmatmul.mubr.f32.gmra.mxu0 %v280
      %v363 = vpop.f32.mrf.mxu0
      %v364 = vadd.f32 0.0, %v363
      %v365 = vpop.f32.mrf.mxu0
      %366 = vdwg.mxu0
      %v367 = vadd.f32 %v233, %v349
      %v368 = vadd.f32 %v234, %v354
      %v369 = vadd.f32 %v235, %v359
      %v370 = vadd.f32 %v236, %v364
      %vm371 = vcmask 31744
      %372 = vst.msk [vmem:[#allocation2] sm:$0xff] %vm371, %v367
      %373 = vst.msk [vmem:[#allocation2 + $0x8] sm:$0xff] %vm371, %v368
      %374 = vst.msk [vmem:[#allocation2 + $0x10] sm:$0xff] %vm371, %v369
      %375 = vst.msk [vmem:[#allocation2 + $0x18] sm:$0xff] %vm371, %v370
      %v376 = vld [vmem:[#allocation3] sm:$0xff]
      %v377 = vmul.f32 %v231, %v231
      %v378 = vadd.f32 %v376, %v377
      %vm379 = vcmask 261120
      %380 = vst.msk [vmem:[#allocation3] sm:$0xff] %vm379, %v378
      // Predicated region
      $region33: #{tpu_custom_call.1} parent=27 // pred_check
        %p381 = pneg %p220
      $region34: #{tpu_custom_call.1} parent=27 // pred_check_branch
        %383 = sbr.rel (%p381) target = $region36
      $region35: #{tpu_custom_call.1} parent=27 // pred_region
        %v384 = vld [vmem:[#allocation2] sm:$0xff]
        %v385 = vld [vmem:[#allocation2 + $0x8] sm:$0xff]
        %v386 = vld [vmem:[#allocation2 + $0x10] sm:$0xff]
        %v387 = vld [vmem:[#allocation2 + $0x18] sm:$0xff]
        %388 = vst.msk [vmem:[%s216] sm:$0xff] %vm371, %v384
        %389 = vst.msk [vmem:[%s216 + $0x8] sm:$0xff] %vm371, %v385
        %390 = vst.msk [vmem:[%s216 + $0x10] sm:$0xff] %vm371, %v386
        %391 = vst.msk [vmem:[%s216 + $0x18] sm:$0xff] %vm371, %v387
        %v392 = vld [vmem:[#allocation3] sm:$0xff]
        %v393 = vsel %vm379, %v392, 0.0
        %394 = vadd.xlane.f32.xlu0 %v393
        %v395 = vpop.xlane.xlu0 %394
        %v396 = vrot.slane %v395, 4
        %v397 = vadd.f32 %v395, %v396
        %v398 = vrot.slane %v397, 2
        %v399 = vadd.f32 %v397, %v398
        %v400 = vrot.slane %v399, 1
        %v401 = vadd.f32 %v399, %v400
        %s402 = vtos %v401
        %v403 = vstv %s402
        %vm404 = vcmask 0
        %405 = vst.msk [vmem:[%s219] sm:$0x1] %vm404, %v403
      $region36: #{tpu_custom_call.1} parent=27 // pred_fallthru
        _
      %p406 = scmp.lt.s32.totalorder %s19, 1
      %s407 = scalar_select %p406, %s19, 1
      %s408 = smul.addr %s407, 4
      %s409 = smul.addr %s408, 8
      %s410 = scalar_lea.vmem %s2, %s409
      %p411 = scmp.lt.s32.totalorder %s19, 1
      %s412 = scalar_select %p411, %s19, 1
      %s413 = scalar_lea.vmem %s3, %s412
      // Predicated region
      $region37: #{tpu_custom_call.1} parent=27 // pred_check
        %p414 = pneg %p101
      $region38: #{tpu_custom_call.1} parent=27 // pred_check_branch
        %416 = sbr.rel (%p414) target = $region40
      $region39: #{tpu_custom_call.1} parent=27 // pred_region
        _
      $region40: #{tpu_custom_call.1} parent=27 // pred_fallthru
        _
      // Predicated region
      $region41: #{tpu_custom_call.1} parent=27 // pred_check
        %p417 = pneg %p127
      $region42: #{tpu_custom_call.1} parent=27 // pred_check_branch
        %419 = sbr.rel (%p417) target = $region44
      $region43: #{tpu_custom_call.1} parent=27 // pred_region
        _
      $region44: #{tpu_custom_call.1} parent=27 // pred_fallthru
        _
    $region28: #{tpu_custom_call.1} parent=5 // pred_fallthru
      _
    %p420 = scmp.le.s32.totalorder 2, %s10
    // Predicated region
    $region45: #{tpu_custom_call.1} parent=5 // pred_check
      %p421 = pneg %p420
    $region46: #{tpu_custom_call.1} parent=5 // pred_check_branch
      %423 = sbr.rel (%p421) target = $region48
    $region47: #{tpu_custom_call.1} parent=5 // pred_region
      %s424 = ssub.s32 %s10, 2
      // Predicated region
      $region49: #{tpu_custom_call.1} parent=47 // pred_check
        %p425 = pneg %p107
      $region50: #{tpu_custom_call.1} parent=47 // pred_check_branch
        %427 = sbr.rel (%p425) target = $region52
      $region51: #{tpu_custom_call.1} parent=47 // pred_region
        %p428 = scmp.lt.s32.totalorder %s21, 1
        %s429 = scalar_select %p428, %s21, 1
        %s430 = smul.addr %s429, 4
        %s431 = smul.addr %s430, 8
        %s432 = scalar_lea.vmem %s2, %s431
      $region52: #{tpu_custom_call.1} parent=47 // pred_fallthru
        _
      // Predicated region
      $region53: #{tpu_custom_call.1} parent=47 // pred_check
        %p433 = pneg %p133
      $region54: #{tpu_custom_call.1} parent=47 // pred_check_branch
        %435 = sbr.rel (%p433) target = $region56
      $region55: #{tpu_custom_call.1} parent=47 // pred_region
        %p436 = scmp.lt.s32.totalorder %s21, 1
        %s437 = scalar_select %p436, %s21, 1
        %s438 = scalar_lea.vmem %s3, %s437
      $region56: #{tpu_custom_call.1} parent=47 // pred_fallthru
        _
    $region48: #{tpu_custom_call.1} parent=5 // pred_fallthru
      _
  $region6: #{tpu_custom_call.1} parent=0 // loop_footer
    %s14 = sadd.s32 1, %s10
  $region7: #{tpu_custom_call.1} parent=0 // loop_footer_branch
    %9 = sbr.rel target = $region3
  $region8: #{tpu_custom_call.1} parent=0 // loop_exit
    _

</llo_original>
